<compile_context>
chip_gen: v7x
topology: tpu7x:2x2x1
jax: 0.10.0
libtpu: 0.0.40
codegen_flags: <defaults>
</compile_context>

<pallas_src>
import functools

import jax
import jax.numpy as jnp
from jax.experimental import pallas as pl
from jax.experimental.pallas import tpu as pltpu


# ----------------------------- config ---------------------------------------
PAIR_REP_DIM = 32       # Config.pair_rep_dim
DISCR_FC_DIM = 64       # Config.discr_fc_dim
DEFAULT_TM = 1024       # batch tile (rows per grid step)
MIN_SPLIT_BATCH = 256   # below this, one grid step (step overhead dominates)


def _nonlinear(x):
    # Config.nonlinear — using ReLU.
    return jnp.maximum(x, 0.0)


def _sigmoid(x):
    return jax.nn.sigmoid(x)


def _round_up(x, m):
    return (x + m - 1) // m * m


def _batch_tile(n, tm):
    """Pick the per-step batch tile.

    - Tiny batches (n <= MIN_SPLIT_BATCH and n <= tm): a single grid step with
      the full batch as the block (legal for any unaligned n; no padding).
    - Otherwise: 8-aligned tile, capped at ~ceil(n/2) (128-aligned) so the
      1-D "parallel" grid always has >= 2 steps (keeps both v7x TensorCores
      busy) and at most `tm` rows (VMEM / pipelining).
    """
    if n <= MIN_SPLIT_BATCH and n <= tm:
        return n
    half = _round_up(-(-n // 2), 128)          # ~n/2, lane-dense if possible
    return max(8, _round_up(min(tm, half), 8))


# ----------------------------- kernel ---------------------------------------
def discriminator_kernel(
    x_ref,                       # [TM, P]                (f32 or bf16)
    w0_ref, b0_ref,              # fc0   : [P, D],  [1, D]
    wcat_ref, bcat_ref,          # fc1|gatefc1|gatefc0 fused: [D, 3D], [1, 3D]
    w2_ref, b2_ref,              # fc2   : [D, D],  [1, D]
    w3_ref, b3_ref,              # fc3   : [1, D],  [1, 1]  (row form, f32)
    out_ref,                     # [1, 1, TM] f32   (lane-dense output row)
):
    f32 = jnp.float32
    d = w2_ref.shape[0]
    cdt = w0_ref.dtype           # MXU operand dtype (f32 or bf16)

    x = x_ref[...].astype(cdt)

    # fc0 + nonlinearity (f32 accumulation, f32 elementwise)
    o1 = _nonlinear(
        jnp.dot(x, w0_ref[...], preferred_element_type=f32) + b0_ref[...]
    )

    # Fused fc1 / gatefc1 / gatefc0: one lane-dense [TM, 3D] matmul.
    y = (
        jnp.dot(o1.astype(cdt), wcat_ref[...], preferred_element_type=f32)
        + bcat_ref[...]
    )
    o2 = _nonlinear(y[:, :d])
    g1 = _sigmoid(y[:, d:2 * d])
    g0 = _sigmoid(y[:, 2 * d:3 * d])

    # fc2 + nonlinearity
    o3 = _nonlinear(
        jnp.dot((o2 * g1).astype(cdt), w2_ref[...], preferred_element_type=f32)
        + b2_ref[...]
    )

    # Final 64 -> 1 projection, produced directly as a lane-major [1, TM] row:
    # contract the D axis of w3 [1, D] with the D axis of z [TM, D]
    # (same MXU pattern as q @ k^T).  Kept in f32; M=1 so the cost is tiny.
    z = o3 * g0                                              # [TM, D] f32
    s_row = jax.lax.dot_general(
        w3_ref[...], z,
        dimension_numbers=(((1,), (1,)), ((), ())),
        preferred_element_type=f32,
    )                                                        # [1, TM]
    out_ref[...] = _sigmoid(s_row + b3_ref[...])[None].astype(out_ref.dtype)


# ----------------------------- params ----------------------------------------
def init_params(key, pair_rep_dim=PAIR_REP_DIM, fc_dim=DISCR_FC_DIM):
    """Mirror Discriminator._init_weight: W ~ U(-0.01, 0.01), bias = 0.

    Weights are stored transposed ([in, out]) so the kernel computes x @ W
    directly; fc3 is stored as its natural [1, fc_dim] row.
    """
    ks = jax.random.split(key, 6)
    u = lambda k, shape: jax.random.uniform(
        k, shape, minval=-0.01, maxval=0.01, dtype=jnp.float32
    )
    return {
        "w0": u(ks[0], (pair_rep_dim, fc_dim)), "b0": jnp.zeros((1, fc_dim), jnp.float32),
        "w1": u(ks[1], (fc_dim, fc_dim)),       "b1": jnp.zeros((1, fc_dim), jnp.float32),
        "gw0": u(ks[2], (fc_dim, fc_dim)),      "gb0": jnp.zeros((1, fc_dim), jnp.float32),
        "gw1": u(ks[3], (fc_dim, fc_dim)),      "gb1": jnp.zeros((1, fc_dim), jnp.float32),
        "w2": u(ks[4], (fc_dim, fc_dim)),       "b2": jnp.zeros((1, fc_dim), jnp.float32),
        "w3": u(ks[5], (1, fc_dim)),            "b3": jnp.zeros((1, 1), jnp.float32),
    }


def prepare_params(params, use_bf16=True):
    """One-time parameter prep (hoisted out of the per-call path).

    - Fuses fc1 / gatefc1 / gatefc0 into a single [D, 3D] weight + [1, 3D]
      bias (one lane-dense MXU matmul in the kernel instead of three).
    - Optionally casts the MXU-operand weights to bf16 (accumulation stays
      f32 in-kernel).  fc3 row + biases stay f32.
    """
    cdt = jnp.bfloat16 if use_bf16 else jnp.float32
    wcat = jnp.concatenate([params["w1"], params["gw1"], params["gw0"]], axis=1)
    bcat = jnp.concatenate([params["b1"], params["gb1"], params["gb0"]], axis=1)
    return {
        "w0": params["w0"].astype(cdt),   "b0": params["b0"].astype(jnp.float32),
        "wcat": wcat.astype(cdt),         "bcat": bcat.astype(jnp.float32),
        "w2": params["w2"].astype(cdt),   "b2": params["b2"].astype(jnp.float32),
        "w3": params["w3"].astype(jnp.float32),
        "b3": params["b3"].astype(jnp.float32),
    }


# ----------------------------- wrapper ---------------------------------------
@functools.partial(jax.jit, static_argnames=("tm",))
def discriminator_forward(x, prepared, *, tm=DEFAULT_TM):
    """Fused forward pass.  x: [N, pair_rep_dim] (f32 or bf16). Returns [N, 1] f32.

    Pass x already in bf16 (with bf16-prepared params) to halve the streamed
    HBM bytes for large N; the wrapper intentionally does not cast x itself.
    """
    n, p = x.shape
    d = prepared["w2"].shape[0]

    tm_eff = _batch_tile(n, tm)
    g = pl.cdiv(n, tm_eff)           # ragged tail tile handled by Pallas (no pad copy)

    # Weights/biases are tiny (~50-100 KB) -> fully VMEM-resident with constant
    # index maps (no re-DMA across grid steps).
    def whole(shape):
        return pl.BlockSpec(shape, lambda i, _s=len(shape): (0,) * _s)

    out = pl.pallas_call(
        discriminator_kernel,
        out_shape=jax.ShapeDtypeStruct((g, 1, tm_eff), jnp.float32),
        grid_spec=pltpu.PrefetchScalarGridSpec(
            num_scalar_prefetch=0,
            grid=(g,),
            in_specs=[
                pl.BlockSpec((tm_eff, p), lambda i: (i, 0)),   # x tile
                whole((p, d)), whole((1, d)),                  # fc0
                whole((d, 3 * d)), whole((1, 3 * d)),          # fused fc1/gates
                whole((d, d)), whole((1, d)),                  # fc2
                whole((1, d)), whole((1, 1)),                  # fc3 row + bias
            ],
            out_specs=pl.BlockSpec((1, 1, tm_eff), lambda i: (i, 0, 0)),
        ),
        compiler_params=pltpu.CompilerParams(
            dimension_semantics=("parallel",),                 # v7x: both TCs
        ),
    )(x, prepared["w0"], prepared["b0"], prepared["wcat"], prepared["bcat"],
      prepared["w2"], prepared["b2"], prepared["w3"], prepared["b3"])

    # (g, 1, tm) is row-major in batch order -> metadata reshape + tail slice.
    return out.reshape(-1, 1)[:n]


# ----------------------------- reference --------------------------------------
def reference_forward(x, params):
    """Pure-JAX reference of the PyTorch forward (eval mode)."""
    o1 = _nonlinear(x @ params["w0"] + params["b0"])
    o2 = _nonlinear(o1 @ params["w1"] + params["b1"])
    g0 = _sigmoid(o1 @ params["gw0"] + params["gb0"])
    g1 = _sigmoid(o1 @ params["gw1"] + params["gb1"])
    o3 = _nonlinear((o2 * g1) @ params["w2"] + params["b2"])
    return _sigmoid((o3 * g0) @ params["w3"].T + params["b3"])


# ----------------------------- main -------------------------------------------
if __name__ == "__main__":
    key = jax.random.PRNGKey(0)
    k1, k2, k3, kp = jax.random.split(key, 4)
    params = init_params(kp)

    prep_f32 = prepare_params(params, use_bf16=False)
    prep_bf16 = prepare_params(params, use_bf16=True)     # default path

    # 1) tiny batch -> single grid step, full-array block (no padding/masking)
    x1 = jax.random.normal(k1, (16, PAIR_REP_DIM), dtype=jnp.float32)
    out1 = jax.block_until_ready(discriminator_forward(x1, prep_f32))
    ref1 = reference_forward(x1, params)
    assert out1.shape == (16, 1), out1.shape
    assert jnp.allclose(out1, ref1, atol=1e-5, rtol=1e-5), (
        float(jnp.max(jnp.abs(out1 - ref1)))
    )

    # 2) ragged batch + multi-step grid with a ragged tail tile (no pad copy),
    #    lane-dense (1, 64)-row output blocks.
    x2 = jax.random.normal(k2, (200, PAIR_REP_DIM), dtype=jnp.float32)
    out2 = jax.block_until_ready(discriminator_forward(x2, prep_f32, tm=64))
    ref2 = reference_forward(x2, params)
    assert out2.shape == (200, 1), out2.shape
    assert jnp.allclose(out2, ref2, atol=1e-5, rtol=1e-5), (
        float(jnp.max(jnp.abs(out2 - ref2)))
    )

    # 3) default bf16 MXU operands + bf16 input stream + >=2-step split path
    #    (two grid steps -> both v7x TensorCores), ragged tail.
    x3 = jax.random.normal(k3, (1000, PAIR_REP_DIM), dtype=jnp.float32)
    ref3 = reference_forward(x3, params)
    out3 = jax.block_until_ready(
        discriminator_forward(x3.astype(jnp.bfloat16), prep_bf16)
    )
    assert out3.shape == (1000, 1), out3.shape
    assert jnp.allclose(out3, ref3, atol=5e-3, rtol=0.0), (
        float(jnp.max(jnp.abs(out3 - ref3)))
    )

    print("KERNEL_OK")
</pallas_src>

<mosaic_0001>
module attributes {stable_mosaic.version = 11 : i64} {
  func.func @discriminator_kernel(%arg0: i32, %arg1: memref<16x32xf32, #tpu.memory_space<vmem>>, %arg2: memref<32x64xf32, #tpu.memory_space<vmem>>, %arg3: memref<1x64xf32, #tpu.memory_space<vmem>>, %arg4: memref<64x192xf32, #tpu.memory_space<vmem>>, %arg5: memref<1x192xf32, #tpu.memory_space<vmem>>, %arg6: memref<64x64xf32, #tpu.memory_space<vmem>>, %arg7: memref<1x64xf32, #tpu.memory_space<vmem>>, %arg8: memref<1x64xf32, #tpu.memory_space<vmem>>, %arg9: memref<1x1xf32, #tpu.memory_space<vmem>>, %arg10: memref<1x1x16xf32, #tpu.memory_space<vmem>>) attributes {dimension_semantics = [#tpu.dimension_semantics<parallel>], iteration_bounds = array<i64: 1>, scalar_prefetch = 0 : i64, scratch_operands = 0 : i64, tpu.core_type = #tpu.core_type<tc>, window_params = [{transform_indices = @transform_0, window_bounds = array<i64: 16, 32>}, {pipeline_mode = #tpu.pipeline_mode<synchronous>, transform_indices = @transform_1, window_bounds = array<i64: 32, 64>}, {pipeline_mode = #tpu.pipeline_mode<synchronous>, transform_indices = @transform_2, window_bounds = array<i64: 1, 64>}, {pipeline_mode = #tpu.pipeline_mode<synchronous>, transform_indices = @transform_3, window_bounds = array<i64: 64, 192>}, {pipeline_mode = #tpu.pipeline_mode<synchronous>, transform_indices = @transform_4, window_bounds = array<i64: 1, 192>}, {pipeline_mode = #tpu.pipeline_mode<synchronous>, transform_indices = @transform_5, window_bounds = array<i64: 64, 64>}, {pipeline_mode = #tpu.pipeline_mode<synchronous>, transform_indices = @transform_6, window_bounds = array<i64: 1, 64>}, {pipeline_mode = #tpu.pipeline_mode<synchronous>, transform_indices = @transform_7, window_bounds = array<i64: 1, 64>}, {pipeline_mode = #tpu.pipeline_mode<synchronous>, transform_indices = @transform_8, window_bounds = array<i64: 1, 1>}, {transform_indices = @transform_9, window_bounds = array<i64: 1, 1, 16>}]} {
    %c0 = arith.constant 0 : index
    %c0_0 = arith.constant 0 : index
    %0 = vector.load %arg1[%c0, %c0_0] : memref<16x32xf32, #tpu.memory_space<vmem>>, vector<16x32xf32>
    %c0_1 = arith.constant 0 : index
    %c0_2 = arith.constant 0 : index
    %1 = vector.load %arg2[%c0_1, %c0_2] : memref<32x64xf32, #tpu.memory_space<vmem>>, vector<32x64xf32>
    %cst = arith.constant dense<0.000000e+00> : vector<16x64xf32>
    %2 = tpu.matmul %0, %1, %cst {dimension_numbers = #tpu.dot_dimension_numbers<[1], [0], [0], [1], [0, 0, 1, 1], [], []>} : vector<16x32xf32>, vector<32x64xf32>, vector<16x64xf32> -> vector<16x64xf32>
    %c0_3 = arith.constant 0 : index
    %c0_4 = arith.constant 0 : index
    %3 = vector.load %arg3[%c0_3, %c0_4] : memref<1x64xf32, #tpu.memory_space<vmem>>, vector<1x64xf32>
    %4 = vector.broadcast %3 : vector<1x64xf32> to vector<16x64xf32>
    %5 = arith.addf %2, %4 : vector<16x64xf32>
    %cst_5 = arith.constant 0.000000e+00 : f32
    %6 = vector.broadcast %cst_5 : f32 to vector<16x64xf32>
    %7 = arith.maximumf %5, %6 : vector<16x64xf32>
    %c0_6 = arith.constant 0 : index
    %c0_7 = arith.constant 0 : index
    %8 = vector.load %arg4[%c0_6, %c0_7] : memref<64x192xf32, #tpu.memory_space<vmem>>, vector<64x192xf32>
    %cst_8 = arith.constant dense<0.000000e+00> : vector<16x192xf32>
    %9 = tpu.matmul %7, %8, %cst_8 {dimension_numbers = #tpu.dot_dimension_numbers<[1], [0], [0], [1], [0, 0, 1, 1], [], []>} : vector<16x64xf32>, vector<64x192xf32>, vector<16x192xf32> -> vector<16x192xf32>
    %c0_9 = arith.constant 0 : index
    %c0_10 = arith.constant 0 : index
    %10 = vector.load %arg5[%c0_9, %c0_10] : memref<1x192xf32, #tpu.memory_space<vmem>>, vector<1x192xf32>
    %11 = vector.broadcast %10 : vector<1x192xf32> to vector<16x192xf32>
    %12 = arith.addf %9, %11 : vector<16x192xf32>
    %13 = vector.extract_strided_slice %12 {offsets = [0, 0], sizes = [16, 64], strides = [1, 1]} : vector<16x192xf32> to vector<16x64xf32>
    %cst_11 = arith.constant 0.000000e+00 : f32
    %14 = vector.broadcast %cst_11 : f32 to vector<16x64xf32>
    %15 = arith.maximumf %13, %14 : vector<16x64xf32>
    %16 = vector.extract_strided_slice %12 {offsets = [0, 64], sizes = [16, 64], strides = [1, 1]} : vector<16x192xf32> to vector<16x64xf32>
    %17 = arith.negf %16 : vector<16x64xf32>
    %18 = math.exp %17 : vector<16x64xf32>
    %cst_12 = arith.constant 1.000000e+00 : f32
    %19 = vector.broadcast %cst_12 : f32 to vector<16x64xf32>
    %20 = arith.addf %19, %18 : vector<16x64xf32>
    %21 = arith.divf %19, %20 : vector<16x64xf32>
    %22 = vector.extract_strided_slice %12 {offsets = [0, 128], sizes = [16, 64], strides = [1, 1]} : vector<16x192xf32> to vector<16x64xf32>
    %23 = arith.negf %22 : vector<16x64xf32>
    %24 = math.exp %23 : vector<16x64xf32>
    %cst_13 = arith.constant 1.000000e+00 : f32
    %25 = vector.broadcast %cst_13 : f32 to vector<16x64xf32>
    %26 = arith.addf %25, %24 : vector<16x64xf32>
    %27 = arith.divf %25, %26 : vector<16x64xf32>
    %28 = arith.mulf %15, %21 : vector<16x64xf32>
    %c0_14 = arith.constant 0 : index
    %c0_15 = arith.constant 0 : index
    %29 = vector.load %arg6[%c0_14, %c0_15] : memref<64x64xf32, #tpu.memory_space<vmem>>, vector<64x64xf32>
    %cst_16 = arith.constant dense<0.000000e+00> : vector<16x64xf32>
    %30 = tpu.matmul %28, %29, %cst_16 {dimension_numbers = #tpu.dot_dimension_numbers<[1], [0], [0], [1], [0, 0, 1, 1], [], []>} : vector<16x64xf32>, vector<64x64xf32>, vector<16x64xf32> -> vector<16x64xf32>
    %c0_17 = arith.constant 0 : index
    %c0_18 = arith.constant 0 : index
    %31 = vector.load %arg7[%c0_17, %c0_18] : memref<1x64xf32, #tpu.memory_space<vmem>>, vector<1x64xf32>
    %32 = vector.broadcast %31 : vector<1x64xf32> to vector<16x64xf32>
    %33 = arith.addf %30, %32 : vector<16x64xf32>
    %cst_19 = arith.constant 0.000000e+00 : f32
    %34 = vector.broadcast %cst_19 : f32 to vector<16x64xf32>
    %35 = arith.maximumf %33, %34 : vector<16x64xf32>
    %36 = arith.mulf %35, %27 : vector<16x64xf32>
    %c0_20 = arith.constant 0 : index
    %c0_21 = arith.constant 0 : index
    %37 = vector.load %arg8[%c0_20, %c0_21] : memref<1x64xf32, #tpu.memory_space<vmem>>, vector<1x64xf32>
    %cst_22 = arith.constant dense<0.000000e+00> : vector<1x16xf32>
    %38 = tpu.matmul %37, %36, %cst_22 {dimension_numbers = #tpu.dot_dimension_numbers<[1], [1], [0], [0], [0, 0, 1, 0], [], []>} : vector<1x64xf32>, vector<16x64xf32>, vector<1x16xf32> -> vector<1x16xf32>
    %c0_23 = arith.constant 0 : index
    %c0_24 = arith.constant 0 : index
    %39 = vector.load %arg9[%c0_23, %c0_24] : memref<1x1xf32, #tpu.memory_space<vmem>>, vector<1x1xf32>
    %40 = vector.broadcast %39 : vector<1x1xf32> to vector<1x16xf32>
    %41 = arith.addf %38, %40 : vector<1x16xf32>
    %42 = arith.negf %41 : vector<1x16xf32>
    %43 = math.exp %42 : vector<1x16xf32>
    %cst_25 = arith.constant 1.000000e+00 : f32
    %44 = vector.broadcast %cst_25 : f32 to vector<1x16xf32>
    %45 = arith.addf %44, %43 : vector<1x16xf32>
    %46 = arith.divf %44, %45 : vector<1x16xf32>
    %47 = vector.shape_cast %46 : vector<1x16xf32> to vector<1x1x16xf32>
    %c0_26 = arith.constant 0 : index
    %c0_27 = arith.constant 0 : index
    %c0_28 = arith.constant 0 : index
    %48 = vector.load %arg10[%c0_26, %c0_27, %c0_28] : memref<1x1x16xf32, #tpu.memory_space<vmem>>, vector<1x1x16xf32>
    tpu.vector_store %arg10[%c0_26, %c0_27, %c0_28], %47 {strides = array<i32>} : memref<1x1x16xf32, #tpu.memory_space<vmem>>, vector<1x1x16xf32>,
    return
  }
  func.func @transform_0(%arg0: i32) -> (i32, i32) {
    %c0_i32 = arith.constant 0 : i32
    %c0_i32_0 = arith.constant 0 : i32
    return %arg0, %c0_i32 : i32, i32
  }
  func.func @transform_1(%arg0: i32) -> (i32, i32) {
    %c0_i32 = arith.constant 0 : i32
    %c0_i32_0 = arith.constant 0 : i32
    %c0_i32_1 = arith.constant 0 : i32
    return %c0_i32, %c0_i32_0 : i32, i32
  }
  func.func @transform_2(%arg0: i32) -> (i32, i32) {
    %c0_i32 = arith.constant 0 : i32
    %c0_i32_0 = arith.constant 0 : i32
    %c0_i32_1 = arith.constant 0 : i32
    return %c0_i32, %c0_i32_0 : i32, i32
  }
  func.func @transform_3(%arg0: i32) -> (i32, i32) {
    %c0_i32 = arith.constant 0 : i32
    %c0_i32_0 = arith.constant 0 : i32
    %c0_i32_1 = arith.constant 0 : i32
    return %c0_i32, %c0_i32_0 : i32, i32
  }
  func.func @transform_4(%arg0: i32) -> (i32, i32) {
    %c0_i32 = arith.constant 0 : i32
    %c0_i32_0 = arith.constant 0 : i32
    %c0_i32_1 = arith.constant 0 : i32
    return %c0_i32, %c0_i32_0 : i32, i32
  }
  func.func @transform_5(%arg0: i32) -> (i32, i32) {
    %c0_i32 = arith.constant 0 : i32
    %c0_i32_0 = arith.constant 0 : i32
    %c0_i32_1 = arith.constant 0 : i32
    return %c0_i32, %c0_i32_0 : i32, i32
  }
  func.func @transform_6(%arg0: i32) -> (i32, i32) {
    %c0_i32 = arith.constant 0 : i32
    %c0_i32_0 = arith.constant 0 : i32
    %c0_i32_1 = arith.constant 0 : i32
    return %c0_i32, %c0_i32_0 : i32, i32
  }
  func.func @transform_7(%arg0: i32) -> (i32, i32) {
    %c0_i32 = arith.constant 0 : i32
    %c0_i32_0 = arith.constant 0 : i32
    %c0_i32_1 = arith.constant 0 : i32
    return %c0_i32, %c0_i32_0 : i32, i32
  }
  func.func @transform_8(%arg0: i32) -> (i32, i32) {
    %c0_i32 = arith.constant 0 : i32
    %c0_i32_0 = arith.constant 0 : i32
    %c0_i32_1 = arith.constant 0 : i32
    return %c0_i32, %c0_i32_0 : i32, i32
  }
  func.func @transform_9(%arg0: i32) -> (i32, i32, i32) {
    %c0_i32 = arith.constant 0 : i32
    %c0_i32_0 = arith.constant 0 : i32
    %c0_i32_1 = arith.constant 0 : i32
    return %arg0, %c0_i32, %c0_i32_0 : i32, i32, i32
  }
}

</mosaic_0001>

<llo_original>
// kernel: discriminator_forward.1
$region0: #{discriminator_forward.1}
  #allocation0 [shape = 'u32[]', space=smem, size = 0x4, offset = 0x4, fixed_abs, tag = 'smem constant byte address 0x4 - core index']
  #allocation1 [shape = 'u32[144,128]{1,0:T(1,128)}', space=vmem, size = 0x12000, scoped, tag = 'internal scratch']
  #allocation2 [shape = 'f32[1,1]{1,0:T(1,128)S(1)}', space=vmem, size = 0x200, scoped, tag = 'scoped memory for discriminator_forward.1']
  %s0 = inlined_call_operand.hbm [shape: f32[16,32], index: 0, kind: input, shape index: {}]
  %s1 = inlined_call_operand.hbm [shape: f32[32,64], index: 1, kind: input, shape index: {}]
  %s2 = inlined_call_operand.vmem [shape: f32[1,64], index: 2, kind: input, shape index: {}]
  %s3 = inlined_call_operand.hbm [shape: f32[64,192], index: 3, kind: input, shape index: {}]
  %s4 = inlined_call_operand.vmem [shape: f32[1,192], index: 4, kind: input, shape index: {}]
  %s5 = inlined_call_operand.hbm [shape: f32[64,64], index: 5, kind: input, shape index: {}]
  %s6 = inlined_call_operand.vmem [shape: f32[1,64], index: 6, kind: input, shape index: {}]
  %s7 = inlined_call_operand.vmem [shape: f32[1,64], index: 7, kind: input, shape index: {}]
  %s8 = inlined_call_operand.<no memory space> [shape: f32[1,1], index: 8, kind: input, shape index: {}]
  %s9 = inlined_call_operand.hbm [shape: f32[1,1,16], index: 9, kind: output, shape index: {}]
  %s10 = sld [smem:[#allocation0]]
  $region62: #{discriminator_forward.1} parent=0
    _
  %s12 = ssub.s32 1, %s10
  %s13 = scalar_select 0, %s12, %s10
  %v14 = vstv %s8
  %15 = vst [vmem:[#allocation2] sm:$0x1] %v14
  $region1: #{discriminator_forward.1} parent=0
    #allocation3 [shape = 'u8[8192]{0}', space=vmem, size = 0x2000, scoped, tag = 'input window, operand 0, single buffered']
    #allocation4 [shape = 's32[1]{0}', space=sflag, size = 0x4, scoped, tag = 'scoped memory for discriminator_forward.1']
    #allocation5 [shape = 's32[1]{0}', space=sflag, size = 0x4, scoped, tag = 'scoped memory for discriminator_forward.1']
    #allocation6 [shape = 'u8[16384]{0}', space=vmem, size = 0x4000, scoped, tag = 'input window, operand 1, single buffered']
    #allocation7 [shape = 's32[1]{0}', space=sflag, size = 0x4, scoped, tag = 'scoped memory for discriminator_forward.1']
    #allocation8 [shape = 'u8[65536]{0}', space=vmem, size = 0x10000, scoped, tag = 'input window, operand 3, single buffered']
    #allocation9 [shape = 'u8[32768]{0}', space=vmem, size = 0x8000, scoped, tag = 'input window, operand 5, single buffered']
    #allocation10 [shape = 's32[1]{0}', space=sflag, size = 0x4, scoped, tag = 'scoped memory for discriminator_forward.1']
    #allocation11 [shape = 'u8[512]{0}', space=vmem, size = 0x400, scoped, tag = 'output window, operand 0, single buffered']
    %16 = vsyncpa [#allocation4], 0
    %17 = vsyncpa [#allocation7], 0
    %18 = vsyncpa [#allocation10], 0
    %19 = vsyncpa [#allocation5], 0
    // Predicated region
    $region2: #{discriminator_forward.1} parent=1 // pred_check
      _
    $region3: #{discriminator_forward.1} parent=1 // pred_check_branch
      %21 = sbr.rel (0) target = $region5
    $region4: #{discriminator_forward.1} parent=1 // pred_region
      %s23 = ssub.s32 256, 256
      %24 = vsyncadd [#allocation4], %s23
      %s25 = sshll.u32 [#allocation3], 4
      %s26 = int_to_ptr.vmem [resolvable:$true] %s25
      %31 = dma.hbm_to_vmem [thread:$0]  %s0, 256, %s26, [#allocation4], 128, 128, 8
    $region5: #{discriminator_forward.1} parent=1 // pred_fallthru
      _
    // Predicated region
    $region6: #{discriminator_forward.1} parent=1 // pred_check
      _
    $region7: #{discriminator_forward.1} parent=1 // pred_check_branch
      %33 = sbr.rel (0) target = $region9
    $region8: #{discriminator_forward.1} parent=1 // pred_region
      %s35 = ssub.s32 512, 512
      %36 = vsyncadd [#allocation7], %s35
      %s37 = sshll.u32 [#allocation6], 4
      %s38 = int_to_ptr.vmem [resolvable:$true] %s37
      %43 = dma.hbm_to_vmem [thread:$0]  %s1, 512, %s38, [#allocation7], 128, 128, 8
    $region9: #{discriminator_forward.1} parent=1 // pred_fallthru
      _
    // Predicated region
    $region10: #{discriminator_forward.1} parent=1 // pred_check
      _
    $region11: #{discriminator_forward.1} parent=1 // pred_check_branch
      %45 = sbr.rel (0) target = $region13
    $region12: #{discriminator_forward.1} parent=1 // pred_region
      _
    $region13: #{discriminator_forward.1} parent=1 // pred_fallthru
      _
    // Predicated region
    $region14: #{discriminator_forward.1} parent=1 // pred_check
      _
    $region15: #{discriminator_forward.1} parent=1 // pred_check_branch
      %47 = sbr.rel (0) target = $region17
    $region16: #{discriminator_forward.1} parent=1 // pred_region
      %s49 = ssub.s32 2048, 2048
      %50 = vsyncadd [#allocation7], %s49
      %s51 = sshll.u32 [#allocation8], 4
      %s52 = int_to_ptr.vmem [resolvable:$true] %s51
      %57 = dma.hbm_to_vmem [thread:$0]  %s3, 2048, %s52, [#allocation7], 256, 256, 16
    $region17: #{discriminator_forward.1} parent=1 // pred_fallthru
      _
    // Predicated region
    $region18: #{discriminator_forward.1} parent=1 // pred_check
      _
    $region19: #{discriminator_forward.1} parent=1 // pred_check_branch
      %59 = sbr.rel (0) target = $region21
    $region20: #{discriminator_forward.1} parent=1 // pred_region
      _
    $region21: #{discriminator_forward.1} parent=1 // pred_fallthru
      _
    // Predicated region
    $region22: #{discriminator_forward.1} parent=1 // pred_check
      _
    $region23: #{discriminator_forward.1} parent=1 // pred_check_branch
      %61 = sbr.rel (0) target = $region25
    $region24: #{discriminator_forward.1} parent=1 // pred_region
      %s63 = ssub.s32 1024, 1024
      %64 = vsyncadd [#allocation10], %s63
      %s65 = sshll.u32 [#allocation9], 4
      %s66 = int_to_ptr.vmem [resolvable:$true] %s65
      %71 = dma.hbm_to_vmem [thread:$0]  %s5, 1024, %s66, [#allocation10], 128, 128, 8
    $region25: #{discriminator_forward.1} parent=1 // pred_fallthru
      _
    // Predicated region
    $region26: #{discriminator_forward.1} parent=1 // pred_check
      _
    $region27: #{discriminator_forward.1} parent=1 // pred_check_branch
      %73 = sbr.rel (0) target = $region29
    $region28: #{discriminator_forward.1} parent=1 // pred_region
      _
    $region29: #{discriminator_forward.1} parent=1 // pred_fallthru
      _
    // Predicated region
    $region30: #{discriminator_forward.1} parent=1 // pred_check
      _
    $region31: #{discriminator_forward.1} parent=1 // pred_check_branch
      %75 = sbr.rel (0) target = $region33
    $region32: #{discriminator_forward.1} parent=1 // pred_region
      _
    $region33: #{discriminator_forward.1} parent=1 // pred_fallthru
      _
    // Predicated region
    $region34: #{discriminator_forward.1} parent=1 // pred_check
      _
    $region35: #{discriminator_forward.1} parent=1 // pred_check_branch
      %77 = sbr.rel (0) target = $region37
    $region36: #{discriminator_forward.1} parent=1 // pred_region
      _
    $region37: #{discriminator_forward.1} parent=1 // pred_fallthru
      _
    // Predicated region
    $region38: #{discriminator_forward.1} parent=1 // pred_check
      _
    $region39: #{discriminator_forward.1} parent=1 // pred_check_branch
      %79 = sbr.rel (0) target = $region41
    $region40: #{discriminator_forward.1} parent=1 // pred_region
      %80 = dma.done [#allocation4], 256
    $region41: #{discriminator_forward.1} parent=1 // pred_fallthru
      _
    // Predicated region
    $region42: #{discriminator_forward.1} parent=1 // pred_check
      _
    $region43: #{discriminator_forward.1} parent=1 // pred_check_branch
      %82 = sbr.rel (0) target = $region45
    $region44: #{discriminator_forward.1} parent=1 // pred_region
      %83 = dma.done [#allocation7], 512
    $region45: #{discriminator_forward.1} parent=1 // pred_fallthru
      _
    // Predicated region
    $region46: #{discriminator_forward.1} parent=1 // pred_check
      _
    $region47: #{discriminator_forward.1} parent=1 // pred_check_branch
      %85 = sbr.rel (0) target = $region49
    $region48: #{discriminator_forward.1} parent=1 // pred_region
      %86 = dma.done [#allocation7], 2048
    $region49: #{discriminator_forward.1} parent=1 // pred_fallthru
      _
    // Predicated region
    $region50: #{discriminator_forward.1} parent=1 // pred_check
      _
    $region51: #{discriminator_forward.1} parent=1 // pred_check_branch
      %88 = sbr.rel (0) target = $region53
    $region52: #{discriminator_forward.1} parent=1 // pred_region
      %89 = dma.done [#allocation10], 1024
    $region53: #{discriminator_forward.1} parent=1 // pred_fallthru
      _
    %v90 = vld [vmem:[#allocation3] sm:$0xff]
    %v91 = vld [vmem:[#allocation3 + $0x8] sm:$0xff]
    %v92 = vld [vmem:[#allocation6] sm:$0xff]
    %v93 = vld [vmem:[#allocation6 + $0x8] sm:$0xff]
    %v94 = vld [vmem:[#allocation6 + $0x10] sm:$0xff]
    %v95 = vld [vmem:[#allocation6 + $0x18] sm:$0xff]
    %v96 = vld [vmem:[%s2] sm:$0x1]
    %v98 = vlaneseq
    %v99 = vshrl.u32 %v98, 7
    %v100 = vsub.s32 0, %v99
    %v101 = vrot.slane %v96, %v100
    %vm103 = vcmask 261120
    %v105 = vsel %vm103, %v90, 0
    %v108 = vsel %vm103, %v91, 0
    %110 = vmatprep.subr.mxu0 0.0
    %111 = vmatpush1.msra.mxu0 %v92
    %112 = vmatprep.subr.mxu0 0.0
    %113 = vmatpush1.msra.mxu0 %v93
    %114 = vmatprep.subr.mxu0 0.0
    %115 = vmatpush1.msra.mxu0 %v94
    %116 = vmatprep.subr.mxu0 0.0
    %117 = vmatpush1.msra.mxu0 %v95
    %118 = vmatprep.subr.mxu0 0.0
    %119 = vmatpush1.msra.mxu0 0.0
    %120 = vmatprep.subr.mxu0 0.0
    %121 = vmatpush1.msra.mxu0 0.0
    %122 = vmatprep.subr.mxu0 0.0
    %123 = vmatpush1.msra.mxu0 0.0
    %124 = vmatprep.subr.mxu0 0.0
    %125 = vmatpush1.msra.mxu0 0.0
    %126 = vmatprep.subr.mxu0 0.0
    %127 = vmatpush1.msra.mxu0 0.0
    %128 = vmatprep.subr.mxu0 0.0
    %129 = vmatpush1.msra.mxu0 0.0
    %130 = vmatprep.subr.mxu0 0.0
    %131 = vmatpush1.msra.mxu0 0.0
    %132 = vmatprep.subr.mxu0 0.0
    %133 = vmatpush1.msra.mxu0 0.0
    %134 = vmatprep.subr.mxu0 0.0
    %135 = vmatpush1.msra.mxu0 0.0
    %136 = vmatprep.subr.mxu0 0.0
    %137 = vmatpush1.msra.mxu0 0.0
    %138 = vmatprep.subr.mxu0 0.0
    %139 = vmatpush1.msra.mxu0 0.0
    %140 = vmatprep.subr.mxu0 0.0
    %141 = vmatpush1.msra.mxu0 0.0
    %142 = vmatprep.subr.mxu0 0.0
    %143 = vmatpush1.msra.mxu0 0.0
    %144 = vmatprep.subr.mxu0 0.0
    %145 = vmatpush1.msra.mxu0 0.0
    %146 = vmatprep.subr.mxu0 0.0
    %147 = vmatpush1.msra.mxu0 0.0
    %148 = vmatprep.subr.mxu0 0.0
    %149 = vmatpush1.msra.mxu0 0.0
    %150 = vmatprep.subr.mxu0 0.0
    %151 = vmatpush1.msra.mxu0 0.0
    %152 = vmatprep.subr.mxu0 0.0
    %153 = vmatpush1.msra.mxu0 0.0
    %154 = vmatprep.subr.mxu0 0.0
    %155 = vmatpush1.msra.mxu0 0.0
    %156 = vmatprep.subr.mxu0 0.0
    %157 = vmatpush1.msra.mxu0 0.0
    %158 = vmatprep.subr.mxu0 0.0
    %159 = vmatpush1.msra.mxu0 0.0
    %160 = vmatprep.subr.mxu0 0.0
    %161 = vmatpush1.msra.mxu0 0.0
    %162 = vmatprep.subr.mxu0 0.0
    %163 = vmatpush1.msra.mxu0 0.0
    %164 = vmatprep.subr.mxu0 0.0
    %165 = vmatpush1.msra.mxu0 0.0
    %166 = vmatprep.subr.mxu0 0.0
    %167 = vmatpush1.msra.mxu0 0.0
    %168 = vmatprep.subr.mxu0 0.0
    %169 = vmatpush1.msra.mxu0 0.0
    %170 = vmatprep.subr.mxu0 0.0
    %171 = vmatpush1.msra.mxu0 0.0
    %172 = vmatprep.subr.mxu0 0.0
    %173 = vmatpush1.msra.mxu0 0.0
    %174 = vmatprep.mubr.f32.mxu0 0.0
    %175 = vmatmul.mubr.f32.gmra.mrb[0].mxu0 %v105
    %v176 = vpop.f32.mrb[0].mxu0
    %v177 = vadd.f32 %v101, %v176
    %v178 = vpop.f32.mrb[0].mxu0
    %179 = vmatprep.mubr.f32.mxu0 0.0
    %180 = vmatmul.mubr.f32.gmra.mrb[0].mxu0 %v108
    %v181 = vpop.f32.mrb[0].mxu0
    %v182 = vadd.f32 %v101, %v181
    %v183 = vpop.f32.mrb[0].mxu0
    %184 = vdwg.mxu0
    %v185 = vmax.f32 %v177, 0.0
    %v186 = vmax.f32 %v182, 0.0
    %v187 = vld [vmem:[#allocation8] sm:$0xff]
    %v188 = vld [vmem:[#allocation8 + $0x8] sm:$0xff]
    %v189 = vld [vmem:[#allocation8 + $0x10] sm:$0xff]
    %v190 = vld [vmem:[#allocation8 + $0x18] sm:$0xff]
    %v191 = vld [vmem:[#allocation8 + $0x20] sm:$0xff]
    %v192 = vld [vmem:[#allocation8 + $0x28] sm:$0xff]
    %v193 = vld [vmem:[#allocation8 + $0x30] sm:$0xff]
    %v194 = vld [vmem:[#allocation8 + $0x38] sm:$0xff]
    %v195 = vld [vmem:[#allocation8 + $0x40] sm:$0xff]
    %v196 = vld [vmem:[#allocation8 + $0x48] sm:$0xff]
    %v197 = vld [vmem:[#allocation8 + $0x50] sm:$0xff]
    %v198 = vld [vmem:[#allocation8 + $0x58] sm:$0xff]
    %v199 = vld [vmem:[#allocation8 + $0x60] sm:$0xff]
    %v200 = vld [vmem:[#allocation8 + $0x68] sm:$0xff]
    %v201 = vld [vmem:[#allocation8 + $0x70] sm:$0xff]
    %v202 = vld [vmem:[#allocation8 + $0x78] sm:$0xff]
    %v203 = vld [vmem:[%s4] sm:$0x3]
    %v205 = vlaneseq
    %v206 = vshrl.u32 %v205, 7
    %v207 = vsub.s32 0, %v206
    %v208 = vrot.slane %v203, %v207
    %v209 = vlaneseq
    %v210 = vshrl.u32 %v209, 7
    %v211 = vsub.s32 1, %v210
    %v212 = vrot.slane %v203, %v211
    %vm215 = vcmask 523264
    %v217 = vsel %vm215, %v185, 0
    %v220 = vsel %vm215, %v186, 0
    %222 = vmatprep.subr.mxu0 %v188
    %223 = vmatpush1.msra.mxu0 %v187
    %224 = vmatprep.subr.mxu0 %v190
    %225 = vmatpush1.msra.mxu0 %v189
    %226 = vmatprep.subr.mxu0 %v192
    %227 = vmatpush1.msra.mxu0 %v191
    %228 = vmatprep.subr.mxu0 %v194
    %229 = vmatpush1.msra.mxu0 %v193
    %230 = vmatprep.subr.mxu0 %v196
    %231 = vmatpush1.msra.mxu0 %v195
    %232 = vmatprep.subr.mxu0 %v198
    %233 = vmatpush1.msra.mxu0 %v197
    %234 = vmatprep.subr.mxu0 %v200
    %235 = vmatpush1.msra.mxu0 %v199
    %236 = vmatprep.subr.mxu0 %v202
    %237 = vmatpush1.msra.mxu0 %v201
    %238 = vmatprep.subr.mxu0 0.0
    %239 = vmatpush1.msra.mxu0 0.0
    %240 = vmatprep.subr.mxu0 0.0
    %241 = vmatpush1.msra.mxu0 0.0
    %242 = vmatprep.subr.mxu0 0.0
    %243 = vmatpush1.msra.mxu0 0.0
    %244 = vmatprep.subr.mxu0 0.0
    %245 = vmatpush1.msra.mxu0 0.0
    %246 = vmatprep.subr.mxu0 0.0
    %247 = vmatpush1.msra.mxu0 0.0
    %248 = vmatprep.subr.mxu0 0.0
    %249 = vmatpush1.msra.mxu0 0.0
    %250 = vmatprep.subr.mxu0 0.0
    %251 = vmatpush1.msra.mxu0 0.0
    %252 = vmatprep.subr.mxu0 0.0
    %253 = vmatpush1.msra.mxu0 0.0
    %254 = vmatprep.subr.mxu0 0.0
    %255 = vmatpush1.msra.mxu0 0.0
    %256 = vmatprep.subr.mxu0 0.0
    %257 = vmatpush1.msra.mxu0 0.0
    %258 = vmatprep.subr.mxu0 0.0
    %259 = vmatpush1.msra.mxu0 0.0
    %260 = vmatprep.subr.mxu0 0.0
    %261 = vmatpush1.msra.mxu0 0.0
    %262 = vmatprep.subr.mxu0 0.0
    %263 = vmatpush1.msra.mxu0 0.0
    %264 = vmatprep.subr.mxu0 0.0
    %265 = vmatpush1.msra.mxu0 0.0
    %266 = vmatprep.subr.mxu0 0.0
    %267 = vmatpush1.msra.mxu0 0.0
    %268 = vmatprep.subr.mxu0 0.0
    %269 = vmatpush1.msra.mxu0 0.0
    %270 = vmatprep.subr.mxu0 0.0
    %271 = vmatpush1.msra.mxu0 0.0
    %272 = vmatprep.subr.mxu0 0.0
    %273 = vmatpush1.msra.mxu0 0.0
    %274 = vmatprep.subr.mxu0 0.0
    %275 = vmatpush1.msra.mxu0 0.0
    %276 = vmatprep.subr.mxu0 0.0
    %277 = vmatpush1.msra.mxu0 0.0
    %278 = vmatprep.subr.mxu0 0.0
    %279 = vmatpush1.msra.mxu0 0.0
    %280 = vmatprep.subr.mxu0 0.0
    %281 = vmatpush1.msra.mxu0 0.0
    %282 = vmatprep.subr.mxu0 0.0
    %283 = vmatpush1.msra.mxu0 0.0
    %284 = vmatprep.subr.mxu0 0.0
    %285 = vmatpush1.msra.mxu0 0.0
    %286 = vmatprep.mubr.f32.mxu0 0.0
    %287 = vmatmul.mubr.f32.gmra.mrb[0].mxu0 %v217
    %v288 = vpop.f32.mrb[0].mxu0
    %v289 = vadd.f32 %v208, %v288
    %v290 = vpop.f32.mrb[0].mxu0
    %v291 = vadd.f32 %v212, %v290
    %292 = vmatprep.mubr.f32.mxu0 0.0
    %293 = vmatmul.mubr.f32.gmra.mrb[0].mxu0 %v220
    %v294 = vpop.f32.mrb[0].mxu0
    %v295 = vadd.f32 %v208, %v294
    %v296 = vpop.f32.mrb[0].mxu0
    %v297 = vadd.f32 %v212, %v296
    %298 = vdwg.mxu0
    %v299 = vmax.f32 %v289, 0.0
    %v300 = vmax.f32 %v295, 0.0
    %v301 = vxor.u32 %v289, 2147483648
    %v302 = vxor.u32 %v295, 2147483648
    %v303 = vmul.f32 %v301, 1.442695
    %v304 = vpow.pop %v303
    %v305 = vmul.f32 %v302, 1.442695
    %v306 = vpow.pop %v305
    %v307 = vadd.f32 %v304, 1.0
    %v308 = vadd.f32 %v306, 1.0
    %v309 = vrcp.pop %v307
    %v310 = vmul.f32 1.0, %v309
    %v311 = vrcp.pop %v308
    %v312 = vmul.f32 1.0, %v311
    %v313 = vxor.u32 %v291, 2147483648
    %v314 = vxor.u32 %v297, 2147483648
    %v315 = vmul.f32 %v313, 1.442695
    %v316 = vpow.pop %v315
    %v317 = vmul.f32 %v314, 1.442695
    %v318 = vpow.pop %v317
    %v319 = vadd.f32 %v316, 1.0
    %v320 = vadd.f32 %v318, 1.0
    %v321 = vrcp.pop %v319
    %v322 = vmul.f32 1.0, %v321
    %v323 = vrcp.pop %v320
    %v324 = vmul.f32 1.0, %v323
    %327 = vrot.lane.b32.xlu0 %v310, 64
    %v328 = vpop.permute.xlu0 %327
    %329 = vrot.lane.b32.xlu0 %v312, 64
    %v330 = vpop.permute.xlu0 %329
    %v333 = vmul.f32 %v299, %v328
    %v334 = vmul.f32 %v300, %v330
    %v335 = vld [vmem:[#allocation9] sm:$0xff]
    %v336 = vld [vmem:[#allocation9 + $0x8] sm:$0xff]
    %v337 = vld [vmem:[#allocation9 + $0x10] sm:$0xff]
    %v338 = vld [vmem:[#allocation9 + $0x18] sm:$0xff]
    %v339 = vld [vmem:[#allocation9 + $0x20] sm:$0xff]
    %v340 = vld [vmem:[#allocation9 + $0x28] sm:$0xff]
    %v341 = vld [vmem:[#allocation9 + $0x30] sm:$0xff]
    %v342 = vld [vmem:[#allocation9 + $0x38] sm:$0xff]
    %v343 = vld [vmem:[%s6] sm:$0x1]
    %v345 = vlaneseq
    %v346 = vshrl.u32 %v345, 7
    %v347 = vsub.s32 0, %v346
    %v348 = vrot.slane %v343, %v347
    %v351 = vsel %vm215, %v333, 0
    %v354 = vsel %vm215, %v334, 0
    %356 = vmatprep.subr.mxu0 0.0
    %357 = vmatpush1.msra.mxu0 %v335
    %358 = vmatprep.subr.mxu0 0.0
    %359 = vmatpush1.msra.mxu0 %v336
    %360 = vmatprep.subr.mxu0 0.0
    %361 = vmatpush1.msra.mxu0 %v337
    %362 = vmatprep.subr.mxu0 0.0
    %363 = vmatpush1.msra.mxu0 %v338
    %364 = vmatprep.subr.mxu0 0.0
    %365 = vmatpush1.msra.mxu0 %v339
    %366 = vmatprep.subr.mxu0 0.0
    %367 = vmatpush1.msra.mxu0 %v340
    %368 = vmatprep.subr.mxu0 0.0
    %369 = vmatpush1.msra.mxu0 %v341
    %370 = vmatprep.subr.mxu0 0.0
    %371 = vmatpush1.msra.mxu0 %v342
    %372 = vmatprep.subr.mxu0 0.0
    %373 = vmatpush1.msra.mxu0 0.0
    %374 = vmatprep.subr.mxu0 0.0
    %375 = vmatpush1.msra.mxu0 0.0
    %376 = vmatprep.subr.mxu0 0.0
    %377 = vmatpush1.msra.mxu0 0.0
    %378 = vmatprep.subr.mxu0 0.0
    %379 = vmatpush1.msra.mxu0 0.0
    %380 = vmatprep.subr.mxu0 0.0
    %381 = vmatpush1.msra.mxu0 0.0
    %382 = vmatprep.subr.mxu0 0.0
    %383 = vmatpush1.msra.mxu0 0.0
    %384 = vmatprep.subr.mxu0 0.0
    %385 = vmatpush1.msra.mxu0 0.0
    %386 = vmatprep.subr.mxu0 0.0
    %387 = vmatpush1.msra.mxu0 0.0
    %388 = vmatprep.subr.mxu0 0.0
    %389 = vmatpush1.msra.mxu0 0.0
    %390 = vmatprep.subr.mxu0 0.0
    %391 = vmatpush1.msra.mxu0 0.0
    %392 = vmatprep.subr.mxu0 0.0
    %393 = vmatpush1.msra.mxu0 0.0
    %394 = vmatprep.subr.mxu0 0.0
    %395 = vmatpush1.msra.mxu0 0.0
    %396 = vmatprep.subr.mxu0 0.0
    %397 = vmatpush1.msra.mxu0 0.0
    %398 = vmatprep.subr.mxu0 0.0
    %399 = vmatpush1.msra.mxu0 0.0
    %400 = vmatprep.subr.mxu0 0.0
    %401 = vmatpush1.msra.mxu0 0.0
    %402 = vmatprep.subr.mxu0 0.0
    %403 = vmatpush1.msra.mxu0 0.0
    %404 = vmatprep.subr.mxu0 0.0
    %405 = vmatpush1.msra.mxu0 0.0
    %406 = vmatprep.subr.mxu0 0.0
    %407 = vmatpush1.msra.mxu0 0.0
    %408 = vmatprep.subr.mxu0 0.0
    %409 = vmatpush1.msra.mxu0 0.0
    %410 = vmatprep.subr.mxu0 0.0
    %411 = vmatpush1.msra.mxu0 0.0
    %412 = vmatprep.subr.mxu0 0.0
    %413 = vmatpush1.msra.mxu0 0.0
    %414 = vmatprep.subr.mxu0 0.0
    %415 = vmatpush1.msra.mxu0 0.0
    %416 = vmatprep.subr.mxu0 0.0
    %417 = vmatpush1.msra.mxu0 0.0
    %418 = vmatprep.subr.mxu0 0.0
    %419 = vmatpush1.msra.mxu0 0.0
    %420 = vmatprep.mubr.f32.mxu0 0.0
    %421 = vmatmul.mubr.f32.gmra.mrb[0].mxu0 %v351
    %v422 = vpop.f32.mrb[0].mxu0
    %v423 = vadd.f32 %v348, %v422
    %v424 = vpop.f32.mrb[0].mxu0
    %425 = vmatprep.mubr.f32.mxu0 0.0
    %426 = vmatmul.mubr.f32.gmra.mrb[0].mxu0 %v354
    %v427 = vpop.f32.mrb[0].mxu0
    %v428 = vadd.f32 %v348, %v427
    %v429 = vpop.f32.mrb[0].mxu0
    %430 = vdwg.mxu0
    %v431 = vmax.f32 %v423, 0.0
    %v432 = vmax.f32 %v428, 0.0
    %v433 = vmul.f32 %v431, %v322
    %v434 = vmul.f32 %v432, %v324
    %v435 = vld [vmem:[%s7] sm:$0x1]
    %v436 = vld [vmem:[#allocation2] sm:$0x1]
    %438 = vset.pattern.permute.xlu0 0
    %439 = vperm.xlu0 %438, %v436
    %v440 = vpop.permute.xlu0 %439
    %v442 = vlaneseq
    %v443 = vshrl.u32 %v442, 7
    %v444 = vsub.s32 0, %v443
    %v445 = vrot.slane %v440, %v444
    %v447 = vsel %vm215, %v435, 0
    %v450 = vsel %vm215, %v433, 0
    %v453 = vsel %vm215, %v434, 0
    %455 = vmatprep.subr.mxu0 0.0
    %456 = vmatpush1.xpose.msra.mxu0 %v450
    %457 = vmatprep.subr.mxu0 0.0
    %458 = vmatpush1.xpose.msra.mxu0 %v453
    %459 = vmatprep.subr.mxu0 0.0
    %460 = vmatpush1.xpose.msra.mxu0 0.0
    %461 = vmatprep.subr.mxu0 0.0
    %462 = vmatpush1.xpose.msra.mxu0 0.0
    %463 = vmatprep.subr.mxu0 0.0
    %464 = vmatpush1.xpose.msra.mxu0 0.0
    %465 = vmatprep.subr.mxu0 0.0
    %466 = vmatpush1.xpose.msra.mxu0 0.0
    %467 = vmatprep.subr.mxu0 0.0
    %468 = vmatpush1.xpose.msra.mxu0 0.0
    %469 = vmatprep.subr.mxu0 0.0
    %470 = vmatpush1.xpose.msra.mxu0 0.0
    %471 = vmatprep.subr.mxu0 0.0
    %472 = vmatpush1.xpose.msra.mxu0 0.0
    %473 = vmatprep.subr.mxu0 0.0
    %474 = vmatpush1.xpose.msra.mxu0 0.0
    %475 = vmatprep.subr.mxu0 0.0
    %476 = vmatpush1.xpose.msra.mxu0 0.0
    %477 = vmatprep.subr.mxu0 0.0
    %478 = vmatpush1.xpose.msra.mxu0 0.0
    %479 = vmatprep.subr.mxu0 0.0
    %480 = vmatpush1.xpose.msra.mxu0 0.0
    %481 = vmatprep.subr.mxu0 0.0
    %482 = vmatpush1.xpose.msra.mxu0 0.0
    %483 = vmatprep.subr.mxu0 0.0
    %484 = vmatpush1.xpose.msra.mxu0 0.0
    %485 = vmatprep.subr.mxu0 0.0
    %486 = vmatpush1.xpose.msra.mxu0 0.0
    %487 = vmatprep.subr.mxu0 0.0
    %488 = vmatpush1.xpose.msra.mxu0 0.0
    %489 = vmatprep.subr.mxu0 0.0
    %490 = vmatpush1.xpose.msra.mxu0 0.0
    %491 = vmatprep.subr.mxu0 0.0
    %492 = vmatpush1.xpose.msra.mxu0 0.0
    %493 = vmatprep.subr.mxu0 0.0
    %494 = vmatpush1.xpose.msra.mxu0 0.0
    %495 = vmatprep.subr.mxu0 0.0
    %496 = vmatpush1.xpose.msra.mxu0 0.0
    %497 = vmatprep.subr.mxu0 0.0
    %498 = vmatpush1.xpose.msra.mxu0 0.0
    %499 = vmatprep.subr.mxu0 0.0
    %500 = vmatpush1.xpose.msra.mxu0 0.0
    %501 = vmatprep.subr.mxu0 0.0
    %502 = vmatpush1.xpose.msra.mxu0 0.0
    %503 = vmatprep.subr.mxu0 0.0
    %504 = vmatpush1.xpose.msra.mxu0 0.0
    %505 = vmatprep.subr.mxu0 0.0
    %506 = vmatpush1.xpose.msra.mxu0 0.0
    %507 = vmatprep.subr.mxu0 0.0
    %508 = vmatpush1.xpose.msra.mxu0 0.0
    %509 = vmatprep.subr.mxu0 0.0
    %510 = vmatpush1.xpose.msra.mxu0 0.0
    %511 = vmatprep.subr.mxu0 0.0
    %512 = vmatpush1.xpose.msra.mxu0 0.0
    %513 = vmatprep.subr.mxu0 0.0
    %514 = vmatpush1.xpose.msra.mxu0 0.0
    %515 = vmatprep.subr.mxu0 0.0
    %516 = vmatpush1.xpose.msra.mxu0 0.0
    %517 = vmatprep.subr.mxu0 0.0
    %518 = vmatpush1.xpose.msra.mxu0 0.0
    %519 = vmatprep.mubr.f32.mxu0 0.0
    %520 = vmatmul.mubr.f32.gmra.mrb[0].mxu0 %v447
    %v521 = vpop.f32.mrb[0].mxu0
    %v522 = vadd.f32 %v445, %v521
    %v523 = vpop.f32.mrb[0].mxu0
    %524 = vdwg.mxu0
    %v525 = vxor.u32 %v522, 2147483648
    %v526 = vmul.f32 %v525, 1.442695
    %v527 = vpow.pop %v526
    %v528 = vadd.f32 %v527, 1.0
    %v529 = vrcp.pop %v528
    %v530 = vmul.f32 1.0, %v529
    %vm531 = vcmask 122880
    %532 = vst.msk [vmem:[#allocation11] sm:$0x1] %vm531, %v530
    // Predicated region
    $region54: #{discriminator_forward.1} parent=1 // pred_check
      _
    $region55: #{discriminator_forward.1} parent=1 // pred_check_branch
      %534 = sbr.rel (0) target = $region57
    $region56: #{discriminator_forward.1} parent=1 // pred_region
      %s536 = ssub.s32 16, 16
      %537 = vsyncadd [#allocation5], %s536
      %s539 = sshll.u32 [#allocation11], 4
      %s540 = int_to_ptr.vmem [resolvable:$true] %s539
      %542 = dma.vmem_to_hbm [thread:$0]  %s540, 16, %s9, [#allocation5]
    $region57: #{discriminator_forward.1} parent=1 // pred_fallthru
      _
    // Predicated region
    $region58: #{discriminator_forward.1} parent=1 // pred_check
      _
    $region59: #{discriminator_forward.1} parent=1 // pred_check_branch
      %544 = sbr.rel (0) target = $region61
    $region60: #{discriminator_forward.1} parent=1 // pred_region
      %545 = dma.done [#allocation5], 16
    $region61: #{discriminator_forward.1} parent=1 // pred_fallthru
      _
    %546 = vsyncpa [#allocation4], 1
    %547 = vsyncpa [#allocation7], 1
    %548 = vsyncpa [#allocation10], 1
    %549 = vsyncpa [#allocation5], 1

</llo_original>
